<compile_context>
chip_gen: v6e
topology: v6e:2x2x1
jax: 0.10.0
libtpu: 0.0.40
codegen_flags: <defaults>
</compile_context>

<pallas_src>
import math

import jax
import jax.numpy as jnp
from jax.experimental import pallas as pl
from jax.experimental.pallas import tpu as pltpu


_MAX_TB = 1024  # batch elements per grid step (384 B of x per element -> ~400 KiB blocks)


# ----------------------------------------------------------------------------- kernel

def _simple_rot_kernel(x_ref, w_ref, o_ref):
    # x_ref: (TB, C, 3)   w_ref: (3, C)   o_ref: (TB, 3, 3)
    x = x_ref[...]
    w = w_ref[...]
    # rot[b, o, j] = sum_c w[o, c] * x[b, c, j]
    prod = x[:, None, :, :] * w[None, :, :, None]        # (TB, 3, C, 3)
    o_ref[...] = jnp.sum(prod, axis=2).astype(o_ref.dtype)


# ----------------------------------------------------------------------------- wrapper

def simple_rot_forward(x, weight, which_strict_rot="None"):
    """x: (B, in_ch, 3, 1) float32.  weight: (3, in_ch) (torch nn.Linear layout, no bias).

    Returns rot_mat of shape (B, 3, 3), matching SimpleRot.forward with
    which_strict_rot == 'None'.
    """
    B, in_ch, three, one = x.shape
    assert three == 3 and one == 1, (three, one)
    assert weight.shape == (3, in_ch), weight.shape

    x3 = x[..., 0]                           # (B, in_ch, 3): free squeeze, no data movement
    tb = min(B, _MAX_TB)

    rot_mat = pl.pallas_call(
        _simple_rot_kernel,
        out_shape=jax.ShapeDtypeStruct((B, 3, 3), x.dtype),
        grid=(pl.cdiv(B, tb),),
        in_specs=[
            pl.BlockSpec((tb, in_ch, 3), lambda i: (i, 0, 0)),   # batch-tiled x
            pl.BlockSpec((3, in_ch), lambda i: (0, 0)),          # whole weight every step
        ],
        out_specs=pl.BlockSpec((tb, 3, 3), lambda i: (i, 0, 0)),
        compiler_params=pltpu.CompilerParams(
            dimension_semantics=("parallel",)),
    )(x3, weight)

    if which_strict_rot != "None":
        # TODO(synk): pc_utils.to_rotation_mat (strict SO(3) projection) is not given in
        # the reference source; only the which_strict_rot == 'None' path is implemented.
        raise NotImplementedError("strict rotation constraint not implemented")
    return rot_mat


# ----------------------------------------------------------------------------- pure-JAX reference

def ref_forward(x, weight):
    # direct translation of VNLinear (transpose / linear / transpose) + squeeze(-1)
    xt = jnp.swapaxes(x, 1, -1)                  # (B, 1, 3, in_ch)
    y = xt @ weight.T                            # (B, 1, 3, 3)
    y = jnp.swapaxes(y, 1, -1)                   # (B, 3, 3, 1)
    return y[..., 0]                             # (B, 3, 3)


# ----------------------------------------------------------------------------- main

if __name__ == "__main__":
    B, in_ch = 2, 32

    key = jax.random.PRNGKey(0)
    kx, kw = jax.random.split(key)

    x = jax.random.normal(kx, (B, in_ch, 3, 1), jnp.float32)
    bound = 1.0 / math.sqrt(in_ch)               # nn.Linear default init range
    weight = jax.random.uniform(kw, (3, in_ch), jnp.float32, -bound, bound)

    rot = simple_rot_forward(x, weight, which_strict_rot="None")
    rot = jax.block_until_ready(rot)

    ref = ref_forward(x, weight)
    assert rot.shape == (B, 3, 3), rot.shape
    max_err = float(jnp.max(jnp.abs(rot - ref)))
    assert jnp.allclose(rot, ref, atol=1e-5, rtol=1e-5), max_err

    print("KERNEL_OK")
</pallas_src>

<mosaic_0001>
module attributes {stable_mosaic.version = 11 : i64} {
  func.func @_simple_rot_kernel(%arg0: i32, %arg1: memref<2x32x3xf32, #tpu.memory_space<vmem>>, %arg2: memref<3x32xf32, #tpu.memory_space<vmem>>, %arg3: memref<2x3x3xf32, #tpu.memory_space<vmem>>) attributes {dimension_semantics = [#tpu.dimension_semantics<parallel>], iteration_bounds = array<i64: 1>, scalar_prefetch = 0 : i64, scratch_operands = 0 : i64, tpu.core_type = #tpu.core_type<tc>, window_params = [{transform_indices = @transform_0, window_bounds = array<i64: 2, 32, 3>}, {pipeline_mode = #tpu.pipeline_mode<synchronous>, transform_indices = @transform_1, window_bounds = array<i64: 3, 32>}, {transform_indices = @transform_2, window_bounds = array<i64: 2, 3, 3>}]} {
    %c0 = arith.constant 0 : index
    %c0_0 = arith.constant 0 : index
    %c0_1 = arith.constant 0 : index
    %0 = vector.load %arg1[%c0, %c0_0, %c0_1] : memref<2x32x3xf32, #tpu.memory_space<vmem>>, vector<2x32x3xf32>
    %c0_2 = arith.constant 0 : index
    %c0_3 = arith.constant 0 : index
    %1 = vector.load %arg2[%c0_2, %c0_3] : memref<3x32xf32, #tpu.memory_space<vmem>>, vector<3x32xf32>
    %2 = vector.shape_cast %0 : vector<2x32x3xf32> to vector<2x1x32x3xf32>
    %3 = vector.shape_cast %1 : vector<3x32xf32> to vector<1x3x32x1xf32>
    %4 = vector.broadcast %2 : vector<2x1x32x3xf32> to vector<2x3x32x3xf32>
    %5 = vector.broadcast %3 : vector<1x3x32x1xf32> to vector<2x3x32x3xf32>
    %6 = arith.mulf %4, %5 : vector<2x3x32x3xf32>
    %cst = arith.constant dense<0.000000e+00> : vector<2x3x3xf32>
    %7 = vector.multi_reduction <add>, %6, %cst [2] : vector<2x3x32x3xf32> to vector<2x3x3xf32>
    %c0_4 = arith.constant 0 : index
    %c0_5 = arith.constant 0 : index
    %c0_6 = arith.constant 0 : index
    %8 = vector.load %arg3[%c0_4, %c0_5, %c0_6] : memref<2x3x3xf32, #tpu.memory_space<vmem>>, vector<2x3x3xf32>
    tpu.vector_store %arg3[%c0_4, %c0_5, %c0_6], %7 {strides = array<i32>} : memref<2x3x3xf32, #tpu.memory_space<vmem>>, vector<2x3x3xf32>,
    return
  }
  func.func @transform_0(%arg0: i32) -> (i32, i32, i32) {
    %c0_i32 = arith.constant 0 : i32
    %c0_i32_0 = arith.constant 0 : i32
    %c0_i32_1 = arith.constant 0 : i32
    return %arg0, %c0_i32, %c0_i32_0 : i32, i32, i32
  }
  func.func @transform_1(%arg0: i32) -> (i32, i32) {
    %c0_i32 = arith.constant 0 : i32
    %c0_i32_0 = arith.constant 0 : i32
    %c0_i32_1 = arith.constant 0 : i32
    return %c0_i32, %c0_i32_0 : i32, i32
  }
  func.func @transform_2(%arg0: i32) -> (i32, i32, i32) {
    %c0_i32 = arith.constant 0 : i32
    %c0_i32_0 = arith.constant 0 : i32
    %c0_i32_1 = arith.constant 0 : i32
    return %arg0, %c0_i32, %c0_i32_0 : i32, i32, i32
  }
}

</mosaic_0001>

<llo_original>
// kernel: tpu_custom_call.1
$region0: #{tpu_custom_call.1}
  #allocation0 [shape = 'u32[]', space=smem, size = 0x4, offset = 0x4, fixed_abs, tag = 'smem constant byte address 0x4 - core index']
  #allocation1 [shape = 'u32[144,128]{1,0:T(1,128)}', space=vmem, size = 0x12000, scoped, tag = 'internal scratch']
  %s0 = inlined_call_operand.vmem [shape: f32[2,32,3], index: 0, kind: input, shape index: {}]
  %s1 = inlined_call_operand.vmem [shape: f32[3,32], index: 1, kind: input, shape index: {}]
  %s2 = inlined_call_operand.vmem [shape: f32[2,3,3], index: 2, kind: output, shape index: {}]
  %s3 = sld [smem:[#allocation0]]
  $region18: #{tpu_custom_call.1} parent=0
    _
  %s5 = ssub.s32 1, %s3
  %s6 = scalar_select 0, %s5, %s3
  // Predicated region
  $region2: #{tpu_custom_call.1} parent=0 // pred_check
    _
  $region3: #{tpu_custom_call.1} parent=0 // pred_check_branch
    %8 = sbr.rel (0) target = $region5
  $region4: #{tpu_custom_call.1} parent=0 // pred_region
    _
  $region5: #{tpu_custom_call.1} parent=0 // pred_fallthru
    _
  // Predicated region
  $region6: #{tpu_custom_call.1} parent=0 // pred_check
    _
  $region7: #{tpu_custom_call.1} parent=0 // pred_check_branch
    %10 = sbr.rel (0) target = $region9
  $region8: #{tpu_custom_call.1} parent=0 // pred_region
    _
  $region9: #{tpu_custom_call.1} parent=0 // pred_fallthru
    _
  %v11 = vld [vmem:[%s0] sm:$0xff]
  %v12 = vld [vmem:[%s0 + $0x8] sm:$0xff]
  %v13 = vld [vmem:[%s0 + $0x10] sm:$0xff]
  %v14 = vld [vmem:[%s0 + $0x18] sm:$0xff]
  %v15 = vld [vmem:[%s0 + $0x20] sm:$0xff]
  %v16 = vld [vmem:[%s0 + $0x28] sm:$0xff]
  %v17 = vld [vmem:[%s0 + $0x30] sm:$0xff]
  %v18 = vld [vmem:[%s0 + $0x38] sm:$0xff]
  %v19 = vld [vmem:[%s1] sm:$0x7]
  %v20 = vlaneseq
  %v21 = vshrl.u32 %v20, 7
  %v22 = vsub.s32 0, %v21
  %v23 = vrot.slane %v19, %v22
  %25 = vbcast.lane.b32.xlu0 %v23, 256
  %v26 = vpop.permute.xlu0 %25
  %s28 = sor.u32 256, 8
  %29 = vbcast.lane.b32.xlu0 %v23, %s28
  %v30 = vpop.permute.xlu0 %29
  %s32 = sor.u32 256, 16
  %33 = vbcast.lane.b32.xlu0 %v23, %s32
  %v34 = vpop.permute.xlu0 %33
  %s36 = sor.u32 256, 24
  %37 = vbcast.lane.b32.xlu0 %v23, %s36
  %v38 = vpop.permute.xlu0 %37
  %v39 = vlaneseq
  %v40 = vshrl.u32 %v39, 7
  %v41 = vsub.s32 1, %v40
  %v42 = vrot.slane %v19, %v41
  %44 = vbcast.lane.b32.xlu0 %v42, 256
  %v45 = vpop.permute.xlu0 %44
  %s47 = sor.u32 256, 8
  %48 = vbcast.lane.b32.xlu0 %v42, %s47
  %v49 = vpop.permute.xlu0 %48
  %s51 = sor.u32 256, 16
  %52 = vbcast.lane.b32.xlu0 %v42, %s51
  %v53 = vpop.permute.xlu0 %52
  %s55 = sor.u32 256, 24
  %56 = vbcast.lane.b32.xlu0 %v42, %s55
  %v57 = vpop.permute.xlu0 %56
  %v58 = vlaneseq
  %v59 = vshrl.u32 %v58, 7
  %v60 = vsub.s32 2, %v59
  %v61 = vrot.slane %v19, %v60
  %63 = vbcast.lane.b32.xlu0 %v61, 256
  %v64 = vpop.permute.xlu0 %63
  %s66 = sor.u32 256, 8
  %67 = vbcast.lane.b32.xlu0 %v61, %s66
  %v68 = vpop.permute.xlu0 %67
  %s70 = sor.u32 256, 16
  %71 = vbcast.lane.b32.xlu0 %v61, %s70
  %v72 = vpop.permute.xlu0 %71
  %s74 = sor.u32 256, 24
  %75 = vbcast.lane.b32.xlu0 %v61, %s74
  %v76 = vpop.permute.xlu0 %75
  %v77 = vmul.f32 %v11, %v26
  %v78 = vmul.f32 %v12, %v30
  %v79 = vmul.f32 %v13, %v34
  %v80 = vmul.f32 %v14, %v38
  %v81 = vmul.f32 %v11, %v45
  %v82 = vmul.f32 %v12, %v49
  %v83 = vmul.f32 %v13, %v53
  %v84 = vmul.f32 %v14, %v57
  %v85 = vmul.f32 %v11, %v64
  %v86 = vmul.f32 %v12, %v68
  %v87 = vmul.f32 %v13, %v72
  %v88 = vmul.f32 %v14, %v76
  %v89 = vmul.f32 %v15, %v26
  %v90 = vmul.f32 %v16, %v30
  %v91 = vmul.f32 %v17, %v34
  %v92 = vmul.f32 %v18, %v38
  %v93 = vmul.f32 %v15, %v45
  %v94 = vmul.f32 %v16, %v49
  %v95 = vmul.f32 %v17, %v53
  %v96 = vmul.f32 %v18, %v57
  %v97 = vmul.f32 %v15, %v64
  %v98 = vmul.f32 %v16, %v68
  %v99 = vmul.f32 %v17, %v72
  %v100 = vmul.f32 %v18, %v76
  %vm101 = vcmask 23552
  %v102 = vsel %vm101, %v77, 0.0
  %v103 = vsel %vm101, %v78, 0.0
  %v104 = vadd.f32 %v102, %v103
  %v105 = vsel %vm101, %v79, 0.0
  %v106 = vadd.f32 %v104, %v105
  %v107 = vsel %vm101, %v80, 0.0
  %v108 = vadd.f32 %v106, %v107
  %v109 = vrot.slane %v108, 4
  %v110 = vadd.f32 %v108, %v109
  %v111 = vrot.slane %v110, 2
  %v112 = vadd.f32 %v110, %v111
  %v113 = vrot.slane %v112, 1
  %v114 = vadd.f32 %v112, %v113
  %v115 = vsel %vm101, %v81, 0.0
  %v116 = vsel %vm101, %v82, 0.0
  %v117 = vadd.f32 %v115, %v116
  %v118 = vsel %vm101, %v83, 0.0
  %v119 = vadd.f32 %v117, %v118
  %v120 = vsel %vm101, %v84, 0.0
  %v121 = vadd.f32 %v119, %v120
  %v122 = vrot.slane %v121, 4
  %v123 = vadd.f32 %v121, %v122
  %v124 = vrot.slane %v123, 2
  %v125 = vadd.f32 %v123, %v124
  %v126 = vrot.slane %v125, 1
  %v127 = vadd.f32 %v125, %v126
  %v128 = vsel %vm101, %v85, 0.0
  %v129 = vsel %vm101, %v86, 0.0
  %v130 = vadd.f32 %v128, %v129
  %v131 = vsel %vm101, %v87, 0.0
  %v132 = vadd.f32 %v130, %v131
  %v133 = vsel %vm101, %v88, 0.0
  %v134 = vadd.f32 %v132, %v133
  %v135 = vrot.slane %v134, 4
  %v136 = vadd.f32 %v134, %v135
  %v137 = vrot.slane %v136, 2
  %v138 = vadd.f32 %v136, %v137
  %v139 = vrot.slane %v138, 1
  %v140 = vadd.f32 %v138, %v139
  %v141 = vsel %vm101, %v89, 0.0
  %v142 = vsel %vm101, %v90, 0.0
  %v143 = vadd.f32 %v141, %v142
  %v144 = vsel %vm101, %v91, 0.0
  %v145 = vadd.f32 %v143, %v144
  %v146 = vsel %vm101, %v92, 0.0
  %v147 = vadd.f32 %v145, %v146
  %v148 = vrot.slane %v147, 4
  %v149 = vadd.f32 %v147, %v148
  %v150 = vrot.slane %v149, 2
  %v151 = vadd.f32 %v149, %v150
  %v152 = vrot.slane %v151, 1
  %v153 = vadd.f32 %v151, %v152
  %v154 = vsel %vm101, %v93, 0.0
  %v155 = vsel %vm101, %v94, 0.0
  %v156 = vadd.f32 %v154, %v155
  %v157 = vsel %vm101, %v95, 0.0
  %v158 = vadd.f32 %v156, %v157
  %v159 = vsel %vm101, %v96, 0.0
  %v160 = vadd.f32 %v158, %v159
  %v161 = vrot.slane %v160, 4
  %v162 = vadd.f32 %v160, %v161
  %v163 = vrot.slane %v162, 2
  %v164 = vadd.f32 %v162, %v163
  %v165 = vrot.slane %v164, 1
  %v166 = vadd.f32 %v164, %v165
  %v167 = vsel %vm101, %v97, 0.0
  %v168 = vsel %vm101, %v98, 0.0
  %v169 = vadd.f32 %v167, %v168
  %v170 = vsel %vm101, %v99, 0.0
  %v171 = vadd.f32 %v169, %v170
  %v172 = vsel %vm101, %v100, 0.0
  %v173 = vadd.f32 %v171, %v172
  %v174 = vrot.slane %v173, 4
  %v175 = vadd.f32 %v173, %v174
  %v176 = vrot.slane %v175, 2
  %v177 = vadd.f32 %v175, %v176
  %v178 = vrot.slane %v177, 1
  %v179 = vadd.f32 %v177, %v178
  %vm186 = vcmask 1041409
  %v187 = vsel %vm186, %v127, %v114
  %vm188 = vcmask 1042434
  %v189 = vsel %vm188, %v140, %v187
  %v190 = vsel %vm186, %v166, %v153
  %v191 = vsel %vm188, %v179, %v190
  %vm194 = vcmask 18432
  %195 = vst.msk [vmem:[%s2] sm:$0x7] %vm194, %v189
  %196 = vst.msk [vmem:[%s2 + $0x4] sm:$0x7] %vm194, %v191
  // Predicated region
  $region10: #{tpu_custom_call.1} parent=0 // pred_check
    _
  $region11: #{tpu_custom_call.1} parent=0 // pred_check_branch
    %198 = sbr.rel (0) target = $region13
  $region12: #{tpu_custom_call.1} parent=0 // pred_region
    _
  $region13: #{tpu_custom_call.1} parent=0 // pred_fallthru
    _
  // Predicated region
  $region14: #{tpu_custom_call.1} parent=0 // pred_check
    _
  $region15: #{tpu_custom_call.1} parent=0 // pred_check_branch
    %200 = sbr.rel (0) target = $region17
  $region16: #{tpu_custom_call.1} parent=0 // pred_region
    _
  $region17: #{tpu_custom_call.1} parent=0 // pred_fallthru
    _

</llo_original>
